<compile_context>
chip_gen: v7x
topology: tpu7x:2x2x1
jax: 0.10.0
libtpu: 0.0.40
codegen_flags: <defaults>
</compile_context>

<pallas_src>
import functools
from typing import Any, NamedTuple

import jax
import jax.numpy as jnp
from jax.experimental import pallas as pl
from jax.experimental.pallas import tpu as pltpu

_MIB = 1024 * 1024


def _round_up(x: int, m: int) -> int:
    return ((x + m - 1) // m) * m


def _cdiv(a: int, b: int) -> int:
    return -(-a // b)


def _sublane_multiple(dtype) -> int:
    # 8 rows / vreg for 32-bit, 16 for 16-bit, 32 for 8-bit dtypes.
    return max(8, 32 // jnp.dtype(dtype).itemsize)


def _tpu_vmem_and_cores():
    """(per-core VMEM capacity bytes, is-multi-TensorCore-chip) with safe fallbacks."""
    try:
        vmem_cap = int(pltpu.get_tpu_info().vmem_capacity_bytes)
    except Exception:
        vmem_cap = 128 * _MIB
    try:
        kind = jax.devices()[0].device_kind.lower()
    except Exception:
        kind = ""
    multi_core = ("v7" in kind) or vmem_cap <= 64 * _MIB
    return vmem_cap, multi_core


def _vmem_budget(vmem_cap: int) -> int:
    # Leave headroom for compiler-internal scratch:
    # ~52 MiB on v7x (64 MiB/TC), ~102 MiB on v5e/v6e (128 MiB/TC).
    return int(max(16 * _MIB, min(vmem_cap - 12 * _MIB, 0.8 * vmem_cap)))


def _choose_tm(batch: int, sub: int, multi_core: bool) -> int:
    """Batch-tile rows: minimize padding waste + per-step overhead; prefer >=2
    tiles on multi-TensorCore chips so the 'parallel' axis uses both cores."""
    if batch <= 32:
        return _round_up(batch, sub)
    best_key, best_tm = None, None
    for tm in (512, 256, 128, 64, 32):
        n_tiles = _cdiv(batch, tm)
        b_pad = n_tiles * tm
        penalty = 1 if (multi_core and n_tiles < 2) else 0
        # b_pad ~ total row work; 32 rows per grid step ~ fixed step overhead.
        key = (penalty, b_pad + 32 * n_tiles, -tm)
        if best_key is None or key < best_key:
            best_key, best_tm = key, tm
    return best_tm


class MLPConfig(NamedTuple):
    n_outputs: int
    fused: bool
    compute_dtype: Any


def prepare_mlp(params, *, compute_dtype=jnp.bfloat16, force_per_layer=False):
    """Pad + cast the weights ONCE (hoisted out of the per-call hot path).

    params: list of (w, b) with w: (d_in, d_out), b: (d_out,) or (1, d_out).
    Returns (padded_params, cfg); pass both to mlp_forward (cfg is static).
    """
    n_layers = len(params)
    dims = [params[0][0].shape[0]] + [w.shape[1] for (w, _) in params]
    n_outputs = dims[-1]
    sub = _sublane_multiple(compute_dtype)
    cd_bytes = jnp.dtype(compute_dtype).itemsize

    vmem_cap, _ = _tpu_vmem_and_cores()
    budget = _vmem_budget(vmem_cap)

    # Hidden/output feature dims are MXU lane dims -> multiples of 128.
    # The network-input dim is contraction-only -> sublane multiple is enough.
    dims_pad = [_round_up(dims[0], sub)] + [_round_up(d, 128) for d in dims[1:]]

    w_resident = sum(
        dims_pad[i] * dims_pad[i + 1] * cd_bytes + dims_pad[i + 1] * 4
        for i in range(n_layers)
    )
    fused = (not force_per_layer) and (w_resident <= budget // 3)
    if not fused:
        # Per-layer K-tiled path: contraction dim must also be 128-tileable.
        dims_pad[0] = _round_up(dims[0], 128)

    padded = []
    for li, (w, b) in enumerate(params):
        d_in, d_out = w.shape
        w_p = (
            jnp.zeros((dims_pad[li], dims_pad[li + 1]), compute_dtype)
            .at[:d_in, :d_out]
            .set(jnp.asarray(w, compute_dtype))
        )
        b_p = (
            jnp.zeros((1, dims_pad[li + 1]), jnp.float32)
            .at[:, :d_out]
            .set(jnp.asarray(b, jnp.float32).reshape(1, -1))
        )
        padded.append((w_p, b_p))

    return padded, MLPConfig(n_outputs=n_outputs, fused=fused, compute_dtype=compute_dtype)


# ----------------------------- fused path ------------------------------------


def _fused_mlp_kernel(*refs, n_layers: int):
    """Whole MLP on one batch tile; all weights resident (single copy) in VMEM.

    refs: (x_ref, w0_ref, b0_ref, ..., o_ref). Matmul inputs in compute dtype,
    accumulation + bias in f32, ReLU after every layer except the last.
    """
    x_ref = refs[0]
    o_ref = refs[1 + 2 * n_layers]

    act = x_ref[...]  # (tm, d0_pad) compute dtype
    y = None
    for li in range(n_layers):
        w_ref = refs[1 + 2 * li]
        b_ref = refs[2 + 2 * li]
        y = jnp.dot(act, w_ref[...], preferred_element_type=jnp.float32)
        if li < n_layers - 1:
            # bias + ReLU + downcast fused in one expression (no extra f32 temp)
            act = jnp.maximum(y + b_ref[...], 0.0).astype(act.dtype)
        else:
            y = y + b_ref[...]
    o_ref[...] = y.astype(o_ref.dtype)


def _mlp_forward_fused(padded_params, x, cfg: MLPConfig):
    n_layers = len(padded_params)
    B, n_in = x.shape
    out_dtype = x.dtype
    compute_dtype = cfg.compute_dtype
    cd_bytes = jnp.dtype(compute_dtype).itemsize
    od_bytes = jnp.dtype(out_dtype).itemsize

    d0_pad = padded_params[0][0].shape[0]
    d_out_pad = padded_params[-1][0].shape[1]
    dims_pad = [d0_pad] + [w.shape[1] for (w, _) in padded_params]

    vmem_cap, multi_core = _tpu_vmem_and_cores()
    budget = _vmem_budget(vmem_cap)
    sub = _sublane_multiple(compute_dtype)
    tm = _choose_tm(B, sub, multi_core)
    B_pad = _round_up(B, tm)

    x_p = (
        jnp.zeros((B_pad, d0_pad), compute_dtype)
        .at[:B, :n_in]
        .set(x.astype(compute_dtype))
    )

    flat_inputs = [x_p]
    in_specs = [pl.BlockSpec((tm, d0_pad), lambda i: (i, 0))]
    for (w_p, b_p) in padded_params:
        flat_inputs += [w_p, b_p]
        # Grid-invariant weights/biases: one resident VMEM copy, no pipelining,
        # no second buffer (halves resident weight footprint vs default specs).
        in_specs += [
            pl.BlockSpec(memory_space=pltpu.MemorySpace.VMEM),
            pl.BlockSpec(memory_space=pltpu.MemorySpace.VMEM),
        ]

    # VMEM estimate: double-buffered x/out tiles + single weight/bias copy
    # + f32 intermediate headroom; capped at the generation-aware budget.
    est = 2 * tm * (d0_pad * cd_bytes + d_out_pad * od_bytes)
    est += sum(
        dims_pad[i] * dims_pad[i + 1] * cd_bytes + dims_pad[i + 1] * 4
        for i in range(n_layers)
    )
    est += 2 * tm * max(dims_pad) * 4
    vmem_limit = int(min(budget, max(32 * _MIB, 2 * est)))

    out_p = pl.pallas_call(
        functools.partial(_fused_mlp_kernel, n_layers=n_layers),
        out_shape=jax.ShapeDtypeStruct((B_pad, d_out_pad), out_dtype),
        grid=(B_pad // tm,),
        in_specs=in_specs,
        out_specs=pl.BlockSpec((tm, d_out_pad), lambda i: (i, 0)),
        compiler_params=pltpu.CompilerParams(
            dimension_semantics=("parallel",),  # batch tiles shard across TCs
            vmem_limit_bytes=vmem_limit,
        ),
    )(*flat_inputs)

    return out_p[:B, : cfg.n_outputs]


# --------------------- per-layer K-tiled fallback path -----------------------


def _linear_kernel(x_ref, w_ref, b_ref, o_ref, acc_ref, *, relu: bool):
    """Tiled linear layer with f32 VMEM accumulator over the K grid axis."""

    @pl.when(pl.program_id(2) == 0)
    def _():
        acc_ref[...] = jnp.zeros_like(acc_ref)

    acc_ref[...] += jnp.dot(x_ref[...], w_ref[...], preferred_element_type=jnp.float32)

    @pl.when(pl.program_id(2) == pl.num_programs(2) - 1)
    def _():
        y = acc_ref[...] + b_ref[...]
        if relu:
            y = jnp.maximum(y, 0.0)
        o_ref[...] = y.astype(o_ref.dtype)


def _pick_tile(dim: int, cands=(512, 384, 256, 128)) -> int:
    for t in cands:
        if dim % t == 0:
            return t
    return dim


def _linear_layer(x_p, w_p, b_p, *, tm, relu, out_dtype, vmem_limit):
    B_pad, K = x_p.shape
    _, N = w_p.shape
    tn = _pick_tile(N)
    tk = _pick_tile(K)
    grid = (B_pad // tm, N // tn, K // tk)
    return pl.pallas_call(
        functools.partial(_linear_kernel, relu=relu),
        out_shape=jax.ShapeDtypeStruct((B_pad, N), out_dtype),
        grid=grid,
        in_specs=[
            pl.BlockSpec((tm, tk), lambda i, j, k: (i, k)),
            pl.BlockSpec((tk, tn), lambda i, j, k: (k, j)),
            pl.BlockSpec((1, tn), lambda i, j, k: (0, j)),
        ],
        out_specs=pl.BlockSpec((tm, tn), lambda i, j, k: (i, j)),
        scratch_shapes=[pltpu.VMEM((tm, tn), jnp.float32)],
        compiler_params=pltpu.CompilerParams(
            dimension_semantics=("parallel", "parallel", "arbitrary"),
            vmem_limit_bytes=int(vmem_limit),
        ),
    )(x_p, w_p, b_p)


def _mlp_forward_layered(padded_params, x, cfg: MLPConfig):
    B, n_in = x.shape
    out_dtype = x.dtype
    compute_dtype = cfg.compute_dtype

    d0_pad = padded_params[0][0].shape[0]
    vmem_cap, multi_core = _tpu_vmem_and_cores()
    budget = _vmem_budget(vmem_cap)
    sub = _sublane_multiple(compute_dtype)
    tm = min(256, _choose_tm(B, sub, multi_core))
    B_pad = _round_up(B, tm)

    act = (
        jnp.zeros((B_pad, d0_pad), compute_dtype)
        .at[:B, :n_in]
        .set(x.astype(compute_dtype))
    )
    n_layers = len(padded_params)
    for li, (w_p, b_p) in enumerate(padded_params):
        last = li == n_layers - 1
        act = _linear_layer(
            act, w_p, b_p, tm=tm, relu=not last,
            out_dtype=out_dtype if last else compute_dtype,
            vmem_limit=budget,
        )
    return act[:B, : cfg.n_outputs]


# ------------------------------- public API -----------------------------------


def mlp_forward(padded_params, x, cfg: MLPConfig):
    """MLP.forward: input -> dropout -> relu, hiddens (-> dropout -> relu), output.

    Dropout is identity (eval mode). cfg must be treated as static (e.g. bound
    via functools.partial before jax.jit).
    """
    if cfg.fused:
        return _mlp_forward_fused(padded_params, x, cfg)
    return _mlp_forward_layered(padded_params, x, cfg)


def init_mlp_params(key, n_inputs, n_outputs, mlp_width, mlp_depth):
    """PyTorch Linear default init: U(-1/sqrt(fan_in), 1/sqrt(fan_in))."""
    dims = [n_inputs] + [mlp_width] * (mlp_depth - 1) + [n_outputs]
    params = []
    for i in range(len(dims) - 1):
        fan_in, fan_out = dims[i], dims[i + 1]
        key, kw, kb = jax.random.split(key, 3)
        bound = 1.0 / (fan_in ** 0.5)
        w = jax.random.uniform(kw, (fan_in, fan_out), jnp.float32, -bound, bound)
        b = jax.random.uniform(kb, (1, fan_out), jnp.float32, -bound, bound)
        params.append((w, b))
    return params


def _reference(params, x):
    """Pure-JAX reference mirroring kernel numerics (bf16 matmul in, f32 accumulate)."""
    ref = x.astype(jnp.float32)
    for i, (w, b) in enumerate(params):
        a = ref.astype(jnp.bfloat16).astype(jnp.float32)
        wc = w.astype(jnp.bfloat16).astype(jnp.float32)
        ref = a @ wc + b.reshape(1, -1)
        if i != len(params) - 1:
            ref = jnp.maximum(ref, 0.0)
    return ref


if __name__ == "__main__":
    # MLP(n_inputs=32, n_outputs=16, width=64, depth=3), batch=8.
    batch = 8
    n_inputs = 32
    n_outputs = 16
    hparams = {"mlp_width": 64, "mlp_depth": 3, "mlp_dropout": 0.0}

    key = jax.random.PRNGKey(0)
    key_x, key_p = jax.random.split(key)
    x = jax.random.normal(key_x, (batch, n_inputs), jnp.float32)
    params = init_mlp_params(
        key_p, n_inputs, n_outputs, hparams["mlp_width"], hparams["mlp_depth"]
    )

    ref = _reference(params, x)

    # Fused single-kernel path (weights padded/cast once, outside the hot path).
    padded, cfg = prepare_mlp(params)
    fwd = jax.jit(functools.partial(mlp_forward, cfg=cfg))
    out = jax.block_until_ready(fwd(padded, x))
    assert out.shape == (batch, n_outputs)
    assert out.dtype == x.dtype
    err_fused = float(jnp.max(jnp.abs(out - ref)))
    assert jnp.allclose(out, ref, atol=5e-3, rtol=5e-3), f"fused max abs err {err_fused}"

    # Also exercise the per-layer K-tiled fallback (used when padded weights
    # would not fit comfortably in VMEM).
    padded_l, cfg_l = prepare_mlp(params, force_per_layer=True)
    fwd_l = jax.jit(functools.partial(mlp_forward, cfg=cfg_l))
    out_l = jax.block_until_ready(fwd_l(padded_l, x))
    err_layered = float(jnp.max(jnp.abs(out_l - ref)))
    assert jnp.allclose(out_l, ref, atol=5e-3, rtol=5e-3), f"layered max abs err {err_layered}"

    print("KERNEL_OK")
</pallas_src>

<mosaic_0001>
module attributes {stable_mosaic.version = 11 : i64} {
  func.func @_fused_mlp_kernel(%arg0: i32, %arg1: memref<16x32xbf16, #tpu.memory_space<vmem>>, %arg2: memref<32x128xbf16, #tpu.memory_space<vmem>>, %arg3: memref<1x128xf32, #tpu.memory_space<vmem>>, %arg4: memref<128x128xbf16, #tpu.memory_space<vmem>>, %arg5: memref<1x128xf32, #tpu.memory_space<vmem>>, %arg6: memref<128x128xbf16, #tpu.memory_space<vmem>>, %arg7: memref<1x128xf32, #tpu.memory_space<vmem>>, %arg8: memref<16x128xf32, #tpu.memory_space<vmem>>) attributes {dimension_semantics = [#tpu.dimension_semantics<parallel>], iteration_bounds = array<i64: 1>, scalar_prefetch = 0 : i64, scratch_operands = 0 : i64, tpu.core_type = #tpu.core_type<tc>, window_params = [{transform_indices = @transform_0, window_bounds = array<i64: 16, 32>}, {pipeline_mode = #tpu.pipeline_mode<synchronous>, transform_indices = @transform_1, window_bounds = array<i64: 32, 128>}, {pipeline_mode = #tpu.pipeline_mode<synchronous>, transform_indices = @transform_2, window_bounds = array<i64: 1, 128>}, {pipeline_mode = #tpu.pipeline_mode<synchronous>, transform_indices = @transform_3, window_bounds = array<i64: 128, 128>}, {pipeline_mode = #tpu.pipeline_mode<synchronous>, transform_indices = @transform_4, window_bounds = array<i64: 1, 128>}, {pipeline_mode = #tpu.pipeline_mode<synchronous>, transform_indices = @transform_5, window_bounds = array<i64: 128, 128>}, {pipeline_mode = #tpu.pipeline_mode<synchronous>, transform_indices = @transform_6, window_bounds = array<i64: 1, 128>}, {transform_indices = @transform_7, window_bounds = array<i64: 16, 128>}]} {
    %c0 = arith.constant 0 : index
    %c0_0 = arith.constant 0 : index
    %0 = vector.load %arg1[%c0, %c0_0] : memref<16x32xbf16, #tpu.memory_space<vmem>>, vector<16x32xbf16>
    %c0_1 = arith.constant 0 : index
    %c0_2 = arith.constant 0 : index
    %1 = vector.load %arg2[%c0_1, %c0_2] : memref<32x128xbf16, #tpu.memory_space<vmem>>, vector<32x128xbf16>
    %cst = arith.constant dense<0.000000e+00> : vector<16x128xf32>
    %2 = tpu.matmul %0, %1, %cst {dimension_numbers = #tpu.dot_dimension_numbers<[1], [0], [0], [1], [0, 0, 1, 1], [], []>} : vector<16x32xbf16>, vector<32x128xbf16>, vector<16x128xf32> -> vector<16x128xf32>
    %c0_3 = arith.constant 0 : index
    %c0_4 = arith.constant 0 : index
    %3 = vector.load %arg3[%c0_3, %c0_4] : memref<1x128xf32, #tpu.memory_space<vmem>>, vector<1x128xf32>
    %4 = vector.broadcast %3 : vector<1x128xf32> to vector<16x128xf32>
    %5 = arith.addf %2, %4 : vector<16x128xf32>
    %cst_5 = arith.constant 0.000000e+00 : f32
    %6 = vector.broadcast %cst_5 : f32 to vector<16x128xf32>
    %7 = arith.maximumf %5, %6 : vector<16x128xf32>
    %8 = arith.truncf %7 : vector<16x128xf32> to vector<16x128xbf16>
    %c0_6 = arith.constant 0 : index
    %c0_7 = arith.constant 0 : index
    %9 = vector.load %arg4[%c0_6, %c0_7] : memref<128x128xbf16, #tpu.memory_space<vmem>>, vector<128x128xbf16>
    %cst_8 = arith.constant dense<0.000000e+00> : vector<16x128xf32>
    %10 = tpu.matmul %8, %9, %cst_8 {dimension_numbers = #tpu.dot_dimension_numbers<[1], [0], [0], [1], [0, 0, 1, 1], [], []>} : vector<16x128xbf16>, vector<128x128xbf16>, vector<16x128xf32> -> vector<16x128xf32>
    %c0_9 = arith.constant 0 : index
    %c0_10 = arith.constant 0 : index
    %11 = vector.load %arg5[%c0_9, %c0_10] : memref<1x128xf32, #tpu.memory_space<vmem>>, vector<1x128xf32>
    %12 = vector.broadcast %11 : vector<1x128xf32> to vector<16x128xf32>
    %13 = arith.addf %10, %12 : vector<16x128xf32>
    %cst_11 = arith.constant 0.000000e+00 : f32
    %14 = vector.broadcast %cst_11 : f32 to vector<16x128xf32>
    %15 = arith.maximumf %13, %14 : vector<16x128xf32>
    %16 = arith.truncf %15 : vector<16x128xf32> to vector<16x128xbf16>
    %c0_12 = arith.constant 0 : index
    %c0_13 = arith.constant 0 : index
    %17 = vector.load %arg6[%c0_12, %c0_13] : memref<128x128xbf16, #tpu.memory_space<vmem>>, vector<128x128xbf16>
    %cst_14 = arith.constant dense<0.000000e+00> : vector<16x128xf32>
    %18 = tpu.matmul %16, %17, %cst_14 {dimension_numbers = #tpu.dot_dimension_numbers<[1], [0], [0], [1], [0, 0, 1, 1], [], []>} : vector<16x128xbf16>, vector<128x128xbf16>, vector<16x128xf32> -> vector<16x128xf32>
    %c0_15 = arith.constant 0 : index
    %c0_16 = arith.constant 0 : index
    %19 = vector.load %arg7[%c0_15, %c0_16] : memref<1x128xf32, #tpu.memory_space<vmem>>, vector<1x128xf32>
    %20 = vector.broadcast %19 : vector<1x128xf32> to vector<16x128xf32>
    %21 = arith.addf %18, %20 : vector<16x128xf32>
    %c0_17 = arith.constant 0 : index
    %c0_18 = arith.constant 0 : index
    %22 = vector.load %arg8[%c0_17, %c0_18] : memref<16x128xf32, #tpu.memory_space<vmem>>, vector<16x128xf32>
    tpu.vector_store %arg8[%c0_17, %c0_18], %21 {strides = array<i32>} : memref<16x128xf32, #tpu.memory_space<vmem>>, vector<16x128xf32>,
    return
  }
  func.func @transform_0(%arg0: i32) -> (i32, i32) {
    %c0_i32 = arith.constant 0 : i32
    %c0_i32_0 = arith.constant 0 : i32
    return %arg0, %c0_i32 : i32, i32
  }
  func.func @transform_1(%arg0: i32) -> (i32, i32) {
    %c0_i32 = arith.constant 0 : i32
    %c0_i32_0 = arith.constant 0 : i32
    %c0_i32_1 = arith.constant 0 : i32
    return %c0_i32, %c0_i32_0 : i32, i32
  }
  func.func @transform_2(%arg0: i32) -> (i32, i32) {
    %c0_i32 = arith.constant 0 : i32
    %c0_i32_0 = arith.constant 0 : i32
    %c0_i32_1 = arith.constant 0 : i32
    return %c0_i32, %c0_i32_0 : i32, i32
  }
  func.func @transform_3(%arg0: i32) -> (i32, i32) {
    %c0_i32 = arith.constant 0 : i32
    %c0_i32_0 = arith.constant 0 : i32
    %c0_i32_1 = arith.constant 0 : i32
    return %c0_i32, %c0_i32_0 : i32, i32
  }
  func.func @transform_4(%arg0: i32) -> (i32, i32) {
    %c0_i32 = arith.constant 0 : i32
    %c0_i32_0 = arith.constant 0 : i32
    %c0_i32_1 = arith.constant 0 : i32
    return %c0_i32, %c0_i32_0 : i32, i32
  }
  func.func @transform_5(%arg0: i32) -> (i32, i32) {
    %c0_i32 = arith.constant 0 : i32
    %c0_i32_0 = arith.constant 0 : i32
    %c0_i32_1 = arith.constant 0 : i32
    return %c0_i32, %c0_i32_0 : i32, i32
  }
  func.func @transform_6(%arg0: i32) -> (i32, i32) {
    %c0_i32 = arith.constant 0 : i32
    %c0_i32_0 = arith.constant 0 : i32
    %c0_i32_1 = arith.constant 0 : i32
    return %c0_i32, %c0_i32_0 : i32, i32
  }
  func.func @transform_7(%arg0: i32) -> (i32, i32) {
    %c0_i32 = arith.constant 0 : i32
    %c0_i32_0 = arith.constant 0 : i32
    return %arg0, %c0_i32 : i32, i32
  }
}

</mosaic_0001>

<llo_original>
// kernel: mlp_forward.1
$region0: #{mlp_forward.1}
  #allocation0 [shape = 'u32[]', space=smem, size = 0x4, offset = 0x4, fixed_abs, tag = 'smem constant byte address 0x4 - core index']
  #allocation1 [shape = 'u32[144,128]{1,0:T(1,128)}', space=vmem, size = 0x12000, scoped, tag = 'internal scratch']
  %s0 = inlined_call_operand.vmem [shape: bf16[16,32], index: 0, kind: input, shape index: {}]
  %s1 = inlined_call_operand.vmem [shape: bf16[32,128], index: 1, kind: input, shape index: {}]
  %s2 = inlined_call_operand.vmem [shape: f32[1,128], index: 2, kind: input, shape index: {}]
  %s3 = inlined_call_operand.hbm [shape: bf16[128,128], index: 3, kind: input, shape index: {}]
  %s4 = inlined_call_operand.vmem [shape: f32[1,128], index: 4, kind: input, shape index: {}]
  %s5 = inlined_call_operand.hbm [shape: bf16[128,128], index: 5, kind: input, shape index: {}]
  %s6 = inlined_call_operand.vmem [shape: f32[1,128], index: 6, kind: input, shape index: {}]
  %s7 = inlined_call_operand.vmem [shape: f32[16,128], index: 7, kind: output, shape index: {}]
  %s8 = sld [smem:[#allocation0]]
  $region46: #{mlp_forward.1} parent=0
    _
  %s10 = ssub.s32 1, %s8
  %s11 = scalar_select 0, %s10, %s8
  $region1: #{mlp_forward.1} parent=0
    #allocation2 [shape = 'u8[32768]{0}', space=vmem, size = 0x8000, scoped, tag = 'input window, operand 3, single buffered']
    #allocation3 [shape = 's32[1]{0}', space=sflag, size = 0x4, scoped, tag = 'scoped memory for mlp_forward.1']
    #allocation4 [shape = 'u8[32768]{0}', space=vmem, size = 0x8000, scoped, tag = 'input window, operand 5, single buffered']
    #allocation5 [shape = 's32[1]{0}', space=sflag, size = 0x4, scoped, tag = 'scoped memory for mlp_forward.1']
    %12 = vsyncpa [#allocation3], 0
    %13 = vsyncpa [#allocation5], 0
    // Predicated region
    $region2: #{mlp_forward.1} parent=1 // pred_check
      _
    $region3: #{mlp_forward.1} parent=1 // pred_check_branch
      %15 = sbr.rel (0) target = $region5
    $region4: #{mlp_forward.1} parent=1 // pred_region
      _
    $region5: #{mlp_forward.1} parent=1 // pred_fallthru
      _
    // Predicated region
    $region6: #{mlp_forward.1} parent=1 // pred_check
      _
    $region7: #{mlp_forward.1} parent=1 // pred_check_branch
      %17 = sbr.rel (0) target = $region9
    $region8: #{mlp_forward.1} parent=1 // pred_region
      _
    $region9: #{mlp_forward.1} parent=1 // pred_fallthru
      _
    // Predicated region
    $region10: #{mlp_forward.1} parent=1 // pred_check
      _
    $region11: #{mlp_forward.1} parent=1 // pred_check_branch
      %19 = sbr.rel (0) target = $region13
    $region12: #{mlp_forward.1} parent=1 // pred_region
      _
    $region13: #{mlp_forward.1} parent=1 // pred_fallthru
      _
    // Predicated region
    $region14: #{mlp_forward.1} parent=1 // pred_check
      _
    $region15: #{mlp_forward.1} parent=1 // pred_check_branch
      %21 = sbr.rel (0) target = $region17
    $region16: #{mlp_forward.1} parent=1 // pred_region
      %s23 = ssub.s32 1024, 1024
      %24 = vsyncadd [#allocation3], %s23
      %s25 = sshll.u32 [#allocation2], 4
      %s26 = int_to_ptr.vmem [resolvable:$true] %s25
      %31 = dma.hbm_to_vmem [thread:$0]  %s3, 1024, %s26, [#allocation3], 64, 64, 4
    $region17: #{mlp_forward.1} parent=1 // pred_fallthru
      _
    // Predicated region
    $region18: #{mlp_forward.1} parent=1 // pred_check
      _
    $region19: #{mlp_forward.1} parent=1 // pred_check_branch
      %33 = sbr.rel (0) target = $region21
    $region20: #{mlp_forward.1} parent=1 // pred_region
      _
    $region21: #{mlp_forward.1} parent=1 // pred_fallthru
      _
    // Predicated region
    $region22: #{mlp_forward.1} parent=1 // pred_check
      _
    $region23: #{mlp_forward.1} parent=1 // pred_check_branch
      %35 = sbr.rel (0) target = $region25
    $region24: #{mlp_forward.1} parent=1 // pred_region
      %s37 = ssub.s32 1024, 1024
      %38 = vsyncadd [#allocation5], %s37
      %s39 = sshll.u32 [#allocation4], 4
      %s40 = int_to_ptr.vmem [resolvable:$true] %s39
      %45 = dma.hbm_to_vmem [thread:$0]  %s5, 1024, %s40, [#allocation5], 64, 64, 4
    $region25: #{mlp_forward.1} parent=1 // pred_fallthru
      _
    // Predicated region
    $region26: #{mlp_forward.1} parent=1 // pred_check
      _
    $region27: #{mlp_forward.1} parent=1 // pred_check_branch
      %47 = sbr.rel (0) target = $region29
    $region28: #{mlp_forward.1} parent=1 // pred_region
      _
    $region29: #{mlp_forward.1} parent=1 // pred_fallthru
      _
    // Predicated region
    $region30: #{mlp_forward.1} parent=1 // pred_check
      _
    $region31: #{mlp_forward.1} parent=1 // pred_check_branch
      %49 = sbr.rel (0) target = $region33
    $region32: #{mlp_forward.1} parent=1 // pred_region
      %50 = dma.done [#allocation3], 1024
    $region33: #{mlp_forward.1} parent=1 // pred_fallthru
      _
    // Predicated region
    $region34: #{mlp_forward.1} parent=1 // pred_check
      _
    $region35: #{mlp_forward.1} parent=1 // pred_check_branch
      %52 = sbr.rel (0) target = $region37
    $region36: #{mlp_forward.1} parent=1 // pred_region
      %53 = dma.done [#allocation5], 1024
    $region37: #{mlp_forward.1} parent=1 // pred_fallthru
      _
    %v55 = vld [vmem:[%s0] sm:$0xf]
    %v56 = vld [vmem:[%s0 + $0x4] sm:$0xf]
    %v57 = vld [vmem:[%s1] sm:$0xf]
    %v58 = vld [vmem:[%s1 + $0x4] sm:$0xf]
    %v59 = vld [vmem:[%s1 + $0x8] sm:$0xf]
    %v60 = vld [vmem:[%s1 + $0xc] sm:$0xf]
    %v61 = vld [vmem:[%s2] sm:$0x1]
    %v63 = vlaneseq
    %v64 = vshrl.u32 %v63, 7
    %v65 = vsub.s32 0, %v64
    %v66 = vrot.slane %v61, %v65
    %v70 = vunpack.c.l.b16 %v55
    %v71 = vunpack.c.l.b16 %v56
    %v72 = vpack.c.b16 %v71, %v70
    %v77 = vunpack.c.l.b16 %v57
    %v78 = vunpack.c.l.b16 %v58
    %v79 = vunpack.c.l.b16 %v59
    %v80 = vunpack.c.l.b16 %v60
    %v81 = vpack.c.b16 %v78, %v77
    %v82 = vpack.c.b16 %v80, %v79
    %vm85 = vcmask 261120
    %v87 = vsel %vm85, %v72, 0
    %89 = vmatprep.subr.bf16.mxu0 0
    %90 = vmatpush1.bf16.msra.mxu0 %v81
    %91 = vmatprep.subr.bf16.mxu0 0
    %92 = vmatpush1.bf16.msra.mxu0 %v82
    %93 = vmatprep.subr.bf16.mxu0 0
    %94 = vmatpush1.bf16.msra.mxu0 0
    %95 = vmatprep.subr.bf16.mxu0 0
    %96 = vmatpush1.bf16.msra.mxu0 0
    %97 = vmatprep.subr.bf16.mxu0 0
    %98 = vmatpush1.bf16.msra.mxu0 0
    %99 = vmatprep.subr.bf16.mxu0 0
    %100 = vmatpush1.bf16.msra.mxu0 0
    %101 = vmatprep.subr.bf16.mxu0 0
    %102 = vmatpush1.bf16.msra.mxu0 0
    %103 = vmatprep.subr.bf16.mxu0 0
    %104 = vmatpush1.bf16.msra.mxu0 0
    %105 = vmatprep.subr.bf16.mxu0 0
    %106 = vmatpush1.bf16.msra.mxu0 0
    %107 = vmatprep.subr.bf16.mxu0 0
    %108 = vmatpush1.bf16.msra.mxu0 0
    %109 = vmatprep.subr.bf16.mxu0 0
    %110 = vmatpush1.bf16.msra.mxu0 0
    %111 = vmatprep.subr.bf16.mxu0 0
    %112 = vmatpush1.bf16.msra.mxu0 0
    %113 = vmatprep.subr.bf16.mxu0 0
    %114 = vmatpush1.bf16.msra.mxu0 0
    %115 = vmatprep.subr.bf16.mxu0 0
    %116 = vmatpush1.bf16.msra.mxu0 0
    %117 = vmatprep.subr.bf16.mxu0 0
    %118 = vmatpush1.bf16.msra.mxu0 0
    %119 = vmatprep.subr.bf16.mxu0 0
    %120 = vmatpush1.bf16.msra.mxu0 0
    %121 = vmatprep.mubr.bf16.mxu0 0
    %122 = vmatmul.mubr.bf16.gmra.mrb[0].mxu0 %v87
    %v123 = vpop.f32.mrb[0].mxu0
    %v124 = vadd.f32 %v66, %v123
    %v125 = vpop.f32.mrb[0].mxu0
    %v126 = vpop.f32.mrb[0].mxu0
    %v127 = vadd.f32 %v66, %v126
    %v128 = vpop.f32.mrb[0].mxu0
    %129 = vdwg.mxu0
    %v130 = vmax.f32 %v124, 0.0
    %v131 = vmax.f32 %v127, 0.0
    %v132 = vpack.c.bf16 %v131, %v130
    %v133 = vld [vmem:[#allocation2] sm:$0xf]
    %v134 = vld [vmem:[#allocation2 + $0x4] sm:$0xf]
    %v135 = vld [vmem:[#allocation2 + $0x8] sm:$0xf]
    %v136 = vld [vmem:[#allocation2 + $0xc] sm:$0xf]
    %v137 = vld [vmem:[#allocation2 + $0x10] sm:$0xf]
    %v138 = vld [vmem:[#allocation2 + $0x14] sm:$0xf]
    %v139 = vld [vmem:[#allocation2 + $0x18] sm:$0xf]
    %v140 = vld [vmem:[#allocation2 + $0x1c] sm:$0xf]
    %v141 = vld [vmem:[#allocation2 + $0x20] sm:$0xf]
    %v142 = vld [vmem:[#allocation2 + $0x24] sm:$0xf]
    %v143 = vld [vmem:[#allocation2 + $0x28] sm:$0xf]
    %v144 = vld [vmem:[#allocation2 + $0x2c] sm:$0xf]
    %v145 = vld [vmem:[#allocation2 + $0x30] sm:$0xf]
    %v146 = vld [vmem:[#allocation2 + $0x34] sm:$0xf]
    %v147 = vld [vmem:[#allocation2 + $0x38] sm:$0xf]
    %v148 = vld [vmem:[#allocation2 + $0x3c] sm:$0xf]
    %v149 = vld [vmem:[%s4] sm:$0x1]
    %v151 = vlaneseq
    %v152 = vshrl.u32 %v151, 7
    %v153 = vsub.s32 0, %v152
    %v154 = vrot.slane %v149, %v153
    %v172 = vunpack.c.l.b16 %v133
    %v173 = vunpack.c.l.b16 %v134
    %v174 = vunpack.c.l.b16 %v135
    %v175 = vunpack.c.l.b16 %v136
    %v176 = vunpack.c.l.b16 %v137
    %v177 = vunpack.c.l.b16 %v138
    %v178 = vunpack.c.l.b16 %v139
    %v179 = vunpack.c.l.b16 %v140
    %v180 = vunpack.c.l.b16 %v141
    %v181 = vunpack.c.l.b16 %v142
    %v182 = vunpack.c.l.b16 %v143
    %v183 = vunpack.c.l.b16 %v144
    %v184 = vunpack.c.l.b16 %v145
    %v185 = vunpack.c.l.b16 %v146
    %v186 = vunpack.c.l.b16 %v147
    %v187 = vunpack.c.l.b16 %v148
    %v188 = vpack.c.b16 %v173, %v172
    %v189 = vpack.c.b16 %v175, %v174
    %v190 = vpack.c.b16 %v177, %v176
    %v191 = vpack.c.b16 %v179, %v178
    %v192 = vpack.c.b16 %v181, %v180
    %v193 = vpack.c.b16 %v183, %v182
    %v194 = vpack.c.b16 %v185, %v184
    %v195 = vpack.c.b16 %v187, %v186
    %204 = vmatprep.subr.bf16.mxu0 0
    %205 = vmatpush1.bf16.msra.mxu0 %v188
    %206 = vmatprep.subr.bf16.mxu0 0
    %207 = vmatpush1.bf16.msra.mxu0 %v189
    %208 = vmatprep.subr.bf16.mxu0 0
    %209 = vmatpush1.bf16.msra.mxu0 %v190
    %210 = vmatprep.subr.bf16.mxu0 0
    %211 = vmatpush1.bf16.msra.mxu0 %v191
    %212 = vmatprep.subr.bf16.mxu0 0
    %213 = vmatpush1.bf16.msra.mxu0 %v192
    %214 = vmatprep.subr.bf16.mxu0 0
    %215 = vmatpush1.bf16.msra.mxu0 %v193
    %216 = vmatprep.subr.bf16.mxu0 0
    %217 = vmatpush1.bf16.msra.mxu0 %v194
    %218 = vmatprep.subr.bf16.mxu0 0
    %219 = vmatpush1.bf16.msra.mxu0 %v195
    %220 = vmatprep.subr.bf16.mxu0 0
    %221 = vmatpush1.bf16.msra.mxu0 0
    %222 = vmatprep.subr.bf16.mxu0 0
    %223 = vmatpush1.bf16.msra.mxu0 0
    %224 = vmatprep.subr.bf16.mxu0 0
    %225 = vmatpush1.bf16.msra.mxu0 0
    %226 = vmatprep.subr.bf16.mxu0 0
    %227 = vmatpush1.bf16.msra.mxu0 0
    %228 = vmatprep.subr.bf16.mxu0 0
    %229 = vmatpush1.bf16.msra.mxu0 0
    %230 = vmatprep.subr.bf16.mxu0 0
    %231 = vmatpush1.bf16.msra.mxu0 0
    %232 = vmatprep.subr.bf16.mxu0 0
    %233 = vmatpush1.bf16.msra.mxu0 0
    %234 = vmatprep.subr.bf16.mxu0 0
    %235 = vmatpush1.bf16.msra.mxu0 0
    %236 = vmatprep.mubr.bf16.mxu0 0
    %237 = vmatmul.mubr.bf16.gmra.mrb[0].mxu0 %v132
    %v238 = vpop.f32.mrb[0].mxu0
    %v239 = vadd.f32 %v154, %v238
    %v240 = vpop.f32.mrb[0].mxu0
    %v241 = vpop.f32.mrb[0].mxu0
    %v242 = vadd.f32 %v154, %v241
    %v243 = vpop.f32.mrb[0].mxu0
    %244 = vdwg.mxu0
    %v245 = vmax.f32 %v239, 0.0
    %v246 = vmax.f32 %v242, 0.0
    %v247 = vpack.c.bf16 %v246, %v245
    %v248 = vld [vmem:[#allocation4] sm:$0xf]
    %v249 = vld [vmem:[#allocation4 + $0x4] sm:$0xf]
    %v250 = vld [vmem:[#allocation4 + $0x8] sm:$0xf]
    %v251 = vld [vmem:[#allocation4 + $0xc] sm:$0xf]
    %v252 = vld [vmem:[#allocation4 + $0x10] sm:$0xf]
    %v253 = vld [vmem:[#allocation4 + $0x14] sm:$0xf]
    %v254 = vld [vmem:[#allocation4 + $0x18] sm:$0xf]
    %v255 = vld [vmem:[#allocation4 + $0x1c] sm:$0xf]
    %v256 = vld [vmem:[#allocation4 + $0x20] sm:$0xf]
    %v257 = vld [vmem:[#allocation4 + $0x24] sm:$0xf]
    %v258 = vld [vmem:[#allocation4 + $0x28] sm:$0xf]
    %v259 = vld [vmem:[#allocation4 + $0x2c] sm:$0xf]
    %v260 = vld [vmem:[#allocation4 + $0x30] sm:$0xf]
    %v261 = vld [vmem:[#allocation4 + $0x34] sm:$0xf]
    %v262 = vld [vmem:[#allocation4 + $0x38] sm:$0xf]
    %v263 = vld [vmem:[#allocation4 + $0x3c] sm:$0xf]
    %v264 = vld [vmem:[%s6] sm:$0x1]
    %v266 = vlaneseq
    %v267 = vshrl.u32 %v266, 7
    %v268 = vsub.s32 0, %v267
    %v269 = vrot.slane %v264, %v268
    %v287 = vunpack.c.l.b16 %v248
    %v288 = vunpack.c.l.b16 %v249
    %v289 = vunpack.c.l.b16 %v250
    %v290 = vunpack.c.l.b16 %v251
    %v291 = vunpack.c.l.b16 %v252
    %v292 = vunpack.c.l.b16 %v253
    %v293 = vunpack.c.l.b16 %v254
    %v294 = vunpack.c.l.b16 %v255
    %v295 = vunpack.c.l.b16 %v256
    %v296 = vunpack.c.l.b16 %v257
    %v297 = vunpack.c.l.b16 %v258
    %v298 = vunpack.c.l.b16 %v259
    %v299 = vunpack.c.l.b16 %v260
    %v300 = vunpack.c.l.b16 %v261
    %v301 = vunpack.c.l.b16 %v262
    %v302 = vunpack.c.l.b16 %v263
    %v303 = vpack.c.b16 %v288, %v287
    %v304 = vpack.c.b16 %v290, %v289
    %v305 = vpack.c.b16 %v292, %v291
    %v306 = vpack.c.b16 %v294, %v293
    %v307 = vpack.c.b16 %v296, %v295
    %v308 = vpack.c.b16 %v298, %v297
    %v309 = vpack.c.b16 %v300, %v299
    %v310 = vpack.c.b16 %v302, %v301
    %319 = vmatprep.subr.bf16.mxu0 0
    %320 = vmatpush1.bf16.msra.mxu0 %v303
    %321 = vmatprep.subr.bf16.mxu0 0
    %322 = vmatpush1.bf16.msra.mxu0 %v304
    %323 = vmatprep.subr.bf16.mxu0 0
    %324 = vmatpush1.bf16.msra.mxu0 %v305
    %325 = vmatprep.subr.bf16.mxu0 0
    %326 = vmatpush1.bf16.msra.mxu0 %v306
    %327 = vmatprep.subr.bf16.mxu0 0
    %328 = vmatpush1.bf16.msra.mxu0 %v307
    %329 = vmatprep.subr.bf16.mxu0 0
    %330 = vmatpush1.bf16.msra.mxu0 %v308
    %331 = vmatprep.subr.bf16.mxu0 0
    %332 = vmatpush1.bf16.msra.mxu0 %v309
    %333 = vmatprep.subr.bf16.mxu0 0
    %334 = vmatpush1.bf16.msra.mxu0 %v310
    %335 = vmatprep.subr.bf16.mxu0 0
    %336 = vmatpush1.bf16.msra.mxu0 0
    %337 = vmatprep.subr.bf16.mxu0 0
    %338 = vmatpush1.bf16.msra.mxu0 0
    %339 = vmatprep.subr.bf16.mxu0 0
    %340 = vmatpush1.bf16.msra.mxu0 0
    %341 = vmatprep.subr.bf16.mxu0 0
    %342 = vmatpush1.bf16.msra.mxu0 0
    %343 = vmatprep.subr.bf16.mxu0 0
    %344 = vmatpush1.bf16.msra.mxu0 0
    %345 = vmatprep.subr.bf16.mxu0 0
    %346 = vmatpush1.bf16.msra.mxu0 0
    %347 = vmatprep.subr.bf16.mxu0 0
    %348 = vmatpush1.bf16.msra.mxu0 0
    %349 = vmatprep.subr.bf16.mxu0 0
    %350 = vmatpush1.bf16.msra.mxu0 0
    %351 = vmatprep.mubr.bf16.mxu0 0
    %352 = vmatmul.mubr.bf16.gmra.mrb[0].mxu0 %v247
    %v353 = vpop.f32.mrb[0].mxu0
    %v354 = vadd.f32 %v269, %v353
    %v355 = vpop.f32.mrb[0].mxu0
    %v356 = vpop.f32.mrb[0].mxu0
    %v357 = vadd.f32 %v269, %v356
    %v358 = vpop.f32.mrb[0].mxu0
    %359 = vdwg.mxu0
    %360 = vst [vmem:[%s7] sm:$0xff] %v354
    %361 = vst [vmem:[%s7 + $0x8] sm:$0xff] %v357
    // Predicated region
    $region38: #{mlp_forward.1} parent=1 // pred_check
      _
    $region39: #{mlp_forward.1} parent=1 // pred_check_branch
      %363 = sbr.rel (0) target = $region41
    $region40: #{mlp_forward.1} parent=1 // pred_region
      _
    $region41: #{mlp_forward.1} parent=1 // pred_fallthru
      _
    // Predicated region
    $region42: #{mlp_forward.1} parent=1 // pred_check
      _
    $region43: #{mlp_forward.1} parent=1 // pred_check_branch
      %365 = sbr.rel (0) target = $region45
    $region44: #{mlp_forward.1} parent=1 // pred_region
      _
    $region45: #{mlp_forward.1} parent=1 // pred_fallthru
      _
    %366 = vsyncpa [#allocation3], 1
    %367 = vsyncpa [#allocation5], 1

</llo_original>
